<compile_context>
chip_gen: v6e
topology: v6e:2x2x1
jax: 0.10.0
libtpu: 0.0.40
codegen_flags: <defaults>
</compile_context>

<pallas_src>
import functools

import jax
import jax.numpy as jnp
from jax.experimental import pallas as pl
from jax.experimental.pallas import tpu as pltpu


def _round_up(x, m):
    return ((x + m - 1) // m) * m


def _ce_partial_kernel(logits_ref, labels_ref, partial_ref, *, n_total):
    """One batch tile: emit sum_i (logsumexp(x_i) - x_i[label_i]) over valid rows."""
    i = pl.program_id(0)

    x = logits_ref[...].astype(jnp.float32)          # (tile_n, C) f32 in vregs
    tile_n, c = x.shape
    labels = labels_ref[...]                          # (tile_n, 1) int32

    # Row max, then work only with (x - m) so the f32 copy of x dies early.
    m = jnp.max(x, axis=-1, keepdims=True)                              # (tile_n, 1)
    xm = x - m                                                          # (tile_n, C)
    col = jax.lax.broadcasted_iota(jnp.int32, (tile_n, c), 1)
    picked_m = jnp.sum(jnp.where(col == labels, xm, 0.0),
                       axis=-1, keepdims=True)                          # x[label] - m
    sum_e = jnp.sum(jnp.exp(xm), axis=-1, keepdims=True)                # (tile_n, 1)

    # logsumexp(x) - x[label] = log(sum_e) + m - x[label] = log(sum_e) - picked_m
    per_row = jnp.log(sum_e) - picked_m                                 # (tile_n, 1)

    # Mask rows that are grid padding (beyond the true batch size).
    # Keep this as a select (not a multiply) so NaN/Inf in padded rows is safe.
    row = i * tile_n + jax.lax.broadcasted_iota(jnp.int32, (tile_n, 1), 0)
    per_row = jnp.where(row < n_total, per_row, 0.0)

    # Small lane-dense partial-sum block: one 512 B unmasked store per step.
    partial_ref[...] = jnp.full(partial_ref.shape, jnp.sum(per_row), jnp.float32)


def _choose_tile_rows(n, c, max_block_bytes=4 << 20):
    """Largest batch tile whose *lane-padded f32* footprint stays <= ~4 MiB.

    Accounting uses round_up(C, 128) lanes x 4 bytes (the in-kernel f32 cast),
    not C * wire-itemsize, so the VMEM estimate is not off by the lane padding
    or the bf16->f32 expansion.  Also guarantees >= 2 grid steps when there is
    enough work (v7x has 2 TensorCores per chip).
    """
    padded_c = _round_up(c, 128)
    budget_rows = max(8, (max_block_bytes // (padded_c * 4)) // 8 * 8)

    tile = n if n <= budget_rows else budget_rows
    if n >= 16:
        # Ensure at least two grid steps so both v7x TensorCores are used.
        tile = min(tile, _round_up(pl.cdiv(n, 2), 8))
    return tile


def cross_entropy_loss(outputs, labels, *, tile_rows=None):
    """outputs: (N, C) float logits; labels: (N,) int class indices -> scalar f32."""
    n, c = outputs.shape
    labels2d = labels.astype(jnp.int32).reshape(n, 1)

    if tile_rows is None:
        tile_rows = _choose_tile_rows(n, c)
    else:
        # Clamp/round caller-supplied values to a layout-legal tile.
        tile_rows = n if tile_rows >= n else max(8, (tile_rows // 8) * 8)
    num_tiles = pl.cdiv(n, tile_rows)

    # Explicit scoped-VMEM limit: 2x wire block (double buffering) + ~6x f32
    # block of temporaries + slack; capped so it fits every generation
    # (v7x: 64 MiB physical VMEM).
    padded_c = _round_up(c, 128)
    f32_block = tile_rows * padded_c * 4
    wire_block = tile_rows * padded_c * outputs.dtype.itemsize
    vmem_limit = int(min(40 << 20, max(2 * wire_block + 6 * f32_block + (1 << 20),
                                       8 << 20)))

    cost = pl.CostEstimate(
        flops=6 * n * c,
        transcendentals=n * c + n,
        bytes_accessed=n * c * outputs.dtype.itemsize + n * 4 + num_tiles * 128 * 4,
    )

    kernel = functools.partial(_ce_partial_kernel, n_total=n)

    partials = pl.pallas_call(
        kernel,
        out_shape=jax.ShapeDtypeStruct((num_tiles, 1, 128), jnp.float32),
        grid_spec=pltpu.PrefetchScalarGridSpec(
            num_scalar_prefetch=0,
            grid=(num_tiles,),
            in_specs=[
                pl.BlockSpec((tile_rows, c), lambda i: (i, 0)),   # logits row tile
                pl.BlockSpec((tile_rows, 1), lambda i: (i, 0)),   # labels row tile
            ],
            out_specs=pl.BlockSpec((1, 1, 128), lambda i: (i, 0, 0)),
        ),
        compiler_params=pltpu.CompilerParams(
            dimension_semantics=("parallel",),
            vmem_limit_bytes=vmem_limit,
        ),
        cost_estimate=cost,
    )(outputs, labels2d)

    return jnp.sum(partials[:, 0, 0]) / jnp.float32(n)


def _reference_loss(outputs, labels):
    x = outputs.astype(jnp.float32)
    lse = jax.nn.logsumexp(x, axis=-1)
    picked = jnp.take_along_axis(x, labels[:, None].astype(jnp.int32), axis=-1)[:, 0]
    return jnp.mean(lse - picked)


if __name__ == "__main__":
    key = jax.random.PRNGKey(0)
    k1, k2, k3, k4, k5, k6 = jax.random.split(key, 6)

    # CIFAR-10-style shapes: small batch, 10 classes, f32 logits (single tile).
    N, C = 8, 10
    outputs = jax.random.normal(k1, (N, C), dtype=jnp.float32)
    labels = jax.random.randint(k2, (N,), 0, C, dtype=jnp.int32)
    loss = cross_entropy_loss(outputs, labels)
    jax.block_until_ready(loss)
    ref = _reference_loss(outputs, labels)
    assert jnp.allclose(loss, ref, atol=1e-5), (loss, ref)

    # Multi-tile grid with a padded last tile and bf16 logits on the wire
    # (caller-supplied tile_rows exercises the clamping path).
    N2, C2 = 20, 10
    outputs2 = jax.random.normal(k3, (N2, C2), dtype=jnp.float32).astype(jnp.bfloat16)
    labels2 = jax.random.randint(k4, (N2,), 0, C2, dtype=jnp.int32)
    loss2 = cross_entropy_loss(outputs2, labels2, tile_rows=8)
    jax.block_until_ready(loss2)
    ref2 = _reference_loss(outputs2, labels2)
    assert jnp.allclose(loss2, ref2, atol=1e-4), (loss2, ref2)

    # Auto tile selection: N=128 => two 64-row tiles (>= 2 grid steps for v7x).
    N3, C3 = 128, 10
    outputs3 = jax.random.normal(k5, (N3, C3), dtype=jnp.float32)
    labels3 = jax.random.randint(k6, (N3,), 0, C3, dtype=jnp.int32)
    loss3 = cross_entropy_loss(outputs3, labels3)
    jax.block_until_ready(loss3)
    ref3 = _reference_loss(outputs3, labels3)
    assert jnp.allclose(loss3, ref3, atol=1e-5), (loss3, ref3)

    print("KERNEL_OK")
</pallas_src>

<mosaic_0001>
module attributes {stable_mosaic.version = 11 : i64} {
  func.func @_ce_partial_kernel(%arg0: i32, %arg1: memref<8x10xf32, #tpu.memory_space<vmem>>, %arg2: memref<8x1xi32, #tpu.memory_space<vmem>>, %arg3: memref<1x1x128xf32, #tpu.memory_space<vmem>>) attributes {dimension_semantics = [#tpu.dimension_semantics<parallel>], iteration_bounds = array<i64: 1>, scalar_prefetch = 0 : i64, scratch_operands = 0 : i64, tpu.core_type = #tpu.core_type<tc>, window_params = [{transform_indices = @transform_0, window_bounds = array<i64: 8, 10>}, {transform_indices = @transform_1, window_bounds = array<i64: 8, 1>}, {transform_indices = @transform_2, window_bounds = array<i64: 1, 1, 128>}]} {
    %c0 = arith.constant 0 : index
    %c0_0 = arith.constant 0 : index
    %0 = vector.load %arg1[%c0, %c0_0] : memref<8x10xf32, #tpu.memory_space<vmem>>, vector<8x10xf32>
    %c0_1 = arith.constant 0 : index
    %c0_2 = arith.constant 0 : index
    %1 = vector.load %arg2[%c0_1, %c0_2] : memref<8x1xi32, #tpu.memory_space<vmem>>, vector<8x1xi32>
    %cst = arith.constant dense<0xFF800000> : vector<8xf32>
    %2 = vector.multi_reduction <maximumf>, %0, %cst [1] : vector<8x10xf32> to vector<8xf32>
    %3 = vector.shape_cast %2 : vector<8xf32> to vector<8x1xf32>
    %4 = vector.broadcast %3 : vector<8x1xf32> to vector<8x10xf32>
    %5 = arith.subf %0, %4 : vector<8x10xf32>
    %6 = tpu.iota {dimensions = array<i32: 1>} : vector<8x10xi32>
    %7 = vector.broadcast %1 : vector<8x1xi32> to vector<8x10xi32>
    %8 = arith.cmpi eq, %6, %7 : vector<8x10xi32>
    %cst_3 = arith.constant 0.000000e+00 : f32
    %9 = vector.broadcast %cst_3 : f32 to vector<8x10xf32>
    %10 = arith.select %8, %5, %9 : vector<8x10xi1>, vector<8x10xf32>
    %cst_4 = arith.constant dense<0.000000e+00> : vector<8xf32>
    %11 = vector.multi_reduction <add>, %10, %cst_4 [1] : vector<8x10xf32> to vector<8xf32>
    %12 = vector.shape_cast %11 : vector<8xf32> to vector<8x1xf32>
    %13 = math.exp %5 : vector<8x10xf32>
    %cst_5 = arith.constant dense<0.000000e+00> : vector<8xf32>
    %14 = vector.multi_reduction <add>, %13, %cst_5 [1] : vector<8x10xf32> to vector<8xf32>
    %15 = vector.shape_cast %14 : vector<8xf32> to vector<8x1xf32>
    %16 = math.log %15 : vector<8x1xf32>
    %17 = arith.subf %16, %12 : vector<8x1xf32>
    %c8_i32 = arith.constant 8 : i32
    %18 = arith.muli %arg0, %c8_i32 : i32
    %19 = tpu.iota {dimensions = array<i32: 0>} : vector<8x1xi32>
    %20 = vector.broadcast %18 : i32 to vector<8x1xi32>
    %21 = arith.addi %20, %19 : vector<8x1xi32>
    %c8_i32_6 = arith.constant 8 : i32
    %22 = vector.broadcast %c8_i32_6 : i32 to vector<8x1xi32>
    %23 = arith.cmpi slt, %21, %22 : vector<8x1xi32>
    %cst_7 = arith.constant 0.000000e+00 : f32
    %24 = vector.broadcast %cst_7 : f32 to vector<8x1xf32>
    %25 = arith.select %23, %17, %24 : vector<8x1xi1>, vector<8x1xf32>
    %26 = vector.shape_cast %25 : vector<8x1xf32> to vector<1x8x1xf32>
    %cst_8 = arith.constant dense<0.000000e+00> : vector<1xf32>
    %27 = vector.multi_reduction <add>, %26, %cst_8 [1, 2] : vector<1x8x1xf32> to vector<1xf32>
    %28 = vector.shape_cast %27 : vector<1xf32> to vector<1x1x1xf32>
    %29 = vector.extract %28[0, 0, 0] : f32 from vector<1x1x1xf32>
    %30 = vector.broadcast %29 : f32 to vector<1x1x128xf32>
    %c0_9 = arith.constant 0 : index
    %c0_10 = arith.constant 0 : index
    %c0_11 = arith.constant 0 : index
    %31 = vector.load %arg3[%c0_9, %c0_10, %c0_11] : memref<1x1x128xf32, #tpu.memory_space<vmem>>, vector<1x1x128xf32>
    tpu.vector_store %arg3[%c0_9, %c0_10, %c0_11], %30 {strides = array<i32>} : memref<1x1x128xf32, #tpu.memory_space<vmem>>, vector<1x1x128xf32>,
    return
  }
  func.func @transform_0(%arg0: i32) -> (i32, i32) {
    %c0_i32 = arith.constant 0 : i32
    %c0_i32_0 = arith.constant 0 : i32
    return %arg0, %c0_i32 : i32, i32
  }
  func.func @transform_1(%arg0: i32) -> (i32, i32) {
    %c0_i32 = arith.constant 0 : i32
    %c0_i32_0 = arith.constant 0 : i32
    return %arg0, %c0_i32 : i32, i32
  }
  func.func @transform_2(%arg0: i32) -> (i32, i32, i32) {
    %c0_i32 = arith.constant 0 : i32
    %c0_i32_0 = arith.constant 0 : i32
    %c0_i32_1 = arith.constant 0 : i32
    return %arg0, %c0_i32, %c0_i32_0 : i32, i32, i32
  }
}

</mosaic_0001>

<llo_original>
// kernel: tpu_custom_call.1
$region0: #{tpu_custom_call.1}
  #allocation0 [shape = 'u32[]', space=smem, size = 0x4, offset = 0x4, fixed_abs, tag = 'smem constant byte address 0x4 - core index']
  #allocation1 [shape = 'u32[144,128]{1,0:T(1,128)}', space=vmem, size = 0x12000, scoped, tag = 'internal scratch']
  %s0 = inlined_call_operand.vmem [shape: f32[8,10], index: 0, kind: input, shape index: {}]
  %s1 = inlined_call_operand.vmem [shape: s32[8,1], index: 1, kind: input, shape index: {}]
  %s2 = inlined_call_operand.hbm [shape: f32[1,1,128], index: 2, kind: output, shape index: {}]
  %s3 = sld [smem:[#allocation0]]
  $region18: #{tpu_custom_call.1} parent=0
    _
  %s5 = ssub.s32 1, %s3
  %s6 = scalar_select 0, %s5, %s3
  $region1: #{tpu_custom_call.1} parent=0
    #allocation2 [shape = 'u8[512]{0}', space=vmem, size = 0x400, scoped, tag = 'output window, operand 0, single buffered']
    #allocation3 [shape = 's32[1]{0}', space=sflag, size = 0x4, scoped, tag = 'scoped memory for tpu_custom_call.1']
    %7 = vsyncpa [#allocation3], 0
    // Predicated region
    $region2: #{tpu_custom_call.1} parent=1 // pred_check
      _
    $region3: #{tpu_custom_call.1} parent=1 // pred_check_branch
      %9 = sbr.rel (0) target = $region5
    $region4: #{tpu_custom_call.1} parent=1 // pred_region
      _
    $region5: #{tpu_custom_call.1} parent=1 // pred_fallthru
      _
    // Predicated region
    $region6: #{tpu_custom_call.1} parent=1 // pred_check
      _
    $region7: #{tpu_custom_call.1} parent=1 // pred_check_branch
      %11 = sbr.rel (0) target = $region9
    $region8: #{tpu_custom_call.1} parent=1 // pred_region
      _
    $region9: #{tpu_custom_call.1} parent=1 // pred_fallthru
      _
    %v12 = vld [vmem:[%s0] sm:$0xff]
    %v13 = vld [vmem:[%s1] sm:$0xff]
    %vm14 = vcmask 80896
    %v15 = vsel %vm14, %v12, -inf
    %16 = vmax.xlane.f32.xlu0 %v15
    %v17 = vpop.xlane.xlu0 %16
    %v18 = vsub.f32 %v12, %v17
    %v19 = vlaneseq
    %v20 = vand.u32 %v19, 127
    %21 = vset.pattern.permute.xlu0 0
    %22 = vperm.xlu0 %21, %v13
    %v23 = vpop.permute.xlu0 %22
    %vm24 = vcmp.eq.s32.totalorder %v20, %v23
    %v25 = vsel %vm24, %v18, 0.0
    %v26 = vsel %vm14, %v25, 0.0
    %27 = vadd.xlane.f32.xlu0 %v26
    %v28 = vpop.xlane.xlu0 %27
    %v29 = vmul.f32 %v18, 1.442695
    %v30 = vpow.pop %v29
    %v31 = vsel %vm14, %v30, 0.0
    %32 = vadd.xlane.f32.xlu0 %v31
    %v33 = vpop.xlane.xlu0 %32
    %v34 = vlog2.pop %v33
    %v35 = vmul.f32 %v34, 0.6931472
    %v36 = vsub.f32 %v35, %v28
    %s37 = smul.u32 0, 8
    %v38 = vlaneseq
    %v39 = vshrl.u32 %v38, 7
    %v40 = vstv %s37
    %v41 = vadd.s32 %v40, %v39
    %vm42 = vcmp.lt.s32.totalorder %v41, 8
    %v43 = vsel %vm42, %v36, 0.0
    %vm44 = vcmask 7168
    %v45 = vsel %vm44, %v43, 0.0
    %46 = vadd.xlane.f32.xlu0 %v45
    %v47 = vpop.xlane.xlu0 %46
    %v48 = vrot.slane %v47, 4
    %v49 = vadd.f32 %v47, %v48
    %v50 = vrot.slane %v49, 2
    %v51 = vadd.f32 %v49, %v50
    %v52 = vrot.slane %v51, 1
    %v53 = vadd.f32 %v51, %v52
    %s54 = vtos %v53
    %v55 = vstv %s54
    %56 = vst [vmem:[#allocation2] sm:$0x1] %v55
    // Predicated region
    $region10: #{tpu_custom_call.1} parent=1 // pred_check
      _
    $region11: #{tpu_custom_call.1} parent=1 // pred_check_branch
      %58 = sbr.rel (0) target = $region13
    $region12: #{tpu_custom_call.1} parent=1 // pred_region
      %s60 = ssub.s32 16, 16
      %61 = vsyncadd [#allocation3], %s60
      %s63 = sshll.u32 [#allocation2], 4
      %s64 = int_to_ptr.vmem [resolvable:$true] %s63
      %66 = dma.vmem_to_hbm [thread:$0]  %s64, 16, %s2, [#allocation3]
    $region13: #{tpu_custom_call.1} parent=1 // pred_fallthru
      _
    // Predicated region
    $region14: #{tpu_custom_call.1} parent=1 // pred_check
      _
    $region15: #{tpu_custom_call.1} parent=1 // pred_check_branch
      %68 = sbr.rel (0) target = $region17
    $region16: #{tpu_custom_call.1} parent=1 // pred_region
      %69 = dma.done [#allocation3], 16
    $region17: #{tpu_custom_call.1} parent=1 // pred_fallthru
      _
    %70 = vsyncpa [#allocation3], 1

</llo_original>
